<compile_context>
chip_gen: v6e
topology: v6e:2x2x1
jax: 0.10.0
libtpu: 0.0.40
codegen_flags: <defaults>
</compile_context>

<pallas_src>
import numpy as np
import jax
import jax.numpy as jnp
from jax import lax
from jax.experimental import pallas as pl
from jax.experimental.pallas import tpu as pltpu


def _edge_gated_conv_kernel(
    node_ref, edge_ref, src_col_ref, dst_col_ref, dst_row_ref,
    w_node_ref, w_edge_ref,
    gn_ref, bn_ref, ge_ref, be_ref,
    xout_ref, yout_ref,
):
    f32 = jnp.float32
    bf16 = jnp.bfloat16
    eps_bn = 1e-5

    N, F = node_ref.shape
    E = edge_ref.shape[0]

    nf = node_ref[...]            # [N, F]
    ef = edge_ref[...]            # [E, F]

    # --- BatchNorm1d (training-mode batch stats, one-pass variance) + SiLU ---
    def bn_silu(v, g, b):
        mu = jnp.mean(v, axis=0, keepdims=True)
        msq = jnp.mean(v * v, axis=0, keepdims=True)
        var = jnp.maximum(msq - mu * mu, 0.0)
        z = (v - mu) * lax.rsqrt(var + eps_bn) * g + b
        return z * jax.nn.sigmoid(z)

    x = bn_silu(nf, gn_ref[...], bn_ref[...])   # [N, F]
    y = bn_silu(ef, ge_ref[...], be_ref[...])   # [E, F]

    # --- fused node projections: one [N, 4F] MXU pass in bf16, f32 accumulation ---
    # columns: [ e_src | Bh | e_dst | Ux ]  (e_src|Bh contiguous for the src-gather below)
    proj = jnp.dot(x.astype(bf16), w_node_ref[...], preferred_element_type=f32)
    gather_tbl = proj[:, : 2 * F].astype(bf16)     # [N, 2F] = [e_src | Bh]
    e_dst = proj[:, 2 * F: 3 * F].astype(bf16)     # [N, F]
    ux = proj[:, 3 * F:]                           # [N, F] (stays f32)

    ey = jnp.dot(y.astype(bf16), w_edge_ref[...], preferred_element_type=f32)  # [E, F]

    # --- one-hot incidence matrices (exact in bf16) ---
    iota_en = lax.broadcasted_iota(jnp.int32, (E, N), 1)
    s_eh = jnp.where(iota_en == src_col_ref[...], 1.0, 0.0).astype(bf16)   # S[k, src[k]] = 1
    d_eh = jnp.where(iota_en == dst_col_ref[...], 1.0, 0.0).astype(bf16)   # D[k, dst[k]] = 1
    iota_ne = lax.broadcasted_iota(jnp.int32, (N, E), 0)
    dt_ne = jnp.where(iota_ne == dst_row_ref[...], 1.0, 0.0).astype(bf16)  # D^T[n, k]

    # --- gathers: e_src[src] and Bh[src] in one 2F-wide matmul; e_dst[dst] in a second ---
    g_src = jnp.dot(s_eh, gather_tbl, preferred_element_type=f32)   # [E, 2F]
    e_src_g = g_src[:, :F]
    bh_g = g_src[:, F:]
    e_dst_g = jnp.dot(d_eh, e_dst, preferred_element_type=f32)      # [E, F]

    # apply_edges(u_add_v) + edge_gate
    y_gate = e_src_g + e_dst_g + ey
    sigma = jax.nn.sigmoid(y_gate)

    # --- scatter-sum to destination nodes: one 2F-wide matmul with D^T ---
    m = bh_g * sigma                                                # [E, F]
    scat_tbl = jnp.concatenate([m, sigma], axis=1).astype(bf16)     # [E, 2F]
    scat = jnp.dot(dt_ne, scat_tbl, preferred_element_type=f32)     # [N, 2F]
    sum_sigma_h = scat[:, :F]
    sum_sigma = scat[:, F:]

    h = sum_sigma_h * pl.reciprocal(sum_sigma + 1e-6, approx=True)

    # node update + residual; edge output is residual on the pre-sigmoid gate logits.
    xout_ref[...] = (nf + ux + h).astype(xout_ref.dtype)
    yout_ref[...] = (ef + y_gate).astype(yout_ref.dtype)


def _vmem_limit_bytes():
    # Leave ~25% headroom below physical VMEM (64 MiB on v7x, 128 MiB on v5e/v6e).
    try:
        cap = int(pltpu.get_tpu_info().vmem_capacity_bytes)
    except Exception:
        cap = 64 << 20
    return cap * 3 // 4


def edge_gated_graph_conv(node_feats, edge_feats, src, dst, params):
    N, F = node_feats.shape
    E = edge_feats.shape[0]
    src_col = src.reshape(E, 1).astype(jnp.int32)
    dst_col = dst.reshape(E, 1).astype(jnp.int32)
    dst_row = dst.reshape(1, E).astype(jnp.int32)

    # Fused node-projection weight, column order [src_gate | dst_update | dst_gate | src_update]
    # so (e_src | Bh) is a contiguous slice for the src-gather matmul.
    w_node = jnp.concatenate(
        [params["w_src_gate"], params["w_dst_update"],
         params["w_dst_gate"], params["w_src_update"]],
        axis=1,
    ).astype(jnp.bfloat16)                                     # [F, 4F]
    w_edge = params["w_edge_gate"].astype(jnp.bfloat16)        # [F, F]

    inputs = (
        node_feats, edge_feats, src_col, dst_col, dst_row, w_node, w_edge,
        params["gamma_n"], params["beta_n"], params["gamma_e"], params["beta_e"],
    )
    vmem = pl.BlockSpec(memory_space=pltpu.MemorySpace.VMEM)
    return pl.pallas_call(
        _edge_gated_conv_kernel,
        out_shape=(
            jax.ShapeDtypeStruct((N, F), node_feats.dtype),
            jax.ShapeDtypeStruct((E, F), edge_feats.dtype),
        ),
        in_specs=[vmem] * len(inputs),
        out_specs=(vmem, vmem),
        # Residual outputs reuse the input HBM buffers (node_feats -> x_out, edge_feats -> y_out).
        input_output_aliases={0: 0, 1: 1},
        compiler_params=pltpu.CompilerParams(vmem_limit_bytes=_vmem_limit_bytes()),
    )(*inputs)


def _reference(node_feats, edge_feats, src, dst, params):
    """Pure-JAX f32 reference of the PyTorch forward (training-mode BatchNorm)."""
    eps_bn = 1e-5

    def bn_silu(v, g, b):
        mu = jnp.mean(v, axis=0, keepdims=True)
        var = jnp.mean((v - mu) ** 2, axis=0, keepdims=True)
        z = (v - mu) / jnp.sqrt(var + eps_bn) * g + b
        return z * jax.nn.sigmoid(z)

    x = bn_silu(node_feats, params["gamma_n"], params["beta_n"])
    y = bn_silu(edge_feats, params["gamma_e"], params["beta_e"])

    e_src = x @ params["w_src_gate"]
    e_dst = x @ params["w_dst_gate"]
    y_gate = e_src[src] + e_dst[dst] + y @ params["w_edge_gate"]
    sigma = jax.nn.sigmoid(y_gate)
    Bh = x @ params["w_dst_update"]
    N = node_feats.shape[0]
    sum_sigma_h = jax.ops.segment_sum(Bh[src] * sigma, dst, num_segments=N)
    sum_sigma = jax.ops.segment_sum(sigma, dst, num_segments=N)
    h = sum_sigma_h / (sum_sigma + 1e-6)
    x_out = node_feats + x @ params["w_src_update"] + h
    y_out = edge_feats + y_gate
    return x_out, y_out


if __name__ == "__main__":
    N, E, H = 32, 64, 128   # nodes, edges, features (node_in == edge_in == out for residual)

    key = jax.random.PRNGKey(0)
    keys = jax.random.split(key, 9)

    node_feats = jax.random.normal(keys[0], (N, H), dtype=jnp.float32)
    edge_feats = jax.random.normal(keys[1], (E, H), dtype=jnp.float32)
    src = jax.random.randint(keys[2], (E,), 0, N, dtype=jnp.int32)
    dst = jax.random.randint(keys[3], (E,), 0, N, dtype=jnp.int32)

    def linear_w(k):  # PyTorch Linear default init U(-1/sqrt(in), 1/sqrt(in)), stored [in, out]
        bound = 1.0 / np.sqrt(H)
        return jax.random.uniform(k, (H, H), jnp.float32, -bound, bound)

    params = {
        "w_src_gate": linear_w(keys[4]),
        "w_dst_gate": linear_w(keys[5]),
        "w_edge_gate": linear_w(keys[6]),
        "w_src_update": linear_w(keys[7]),
        "w_dst_update": linear_w(keys[8]),
        "gamma_n": jnp.ones((1, H), jnp.float32),
        "beta_n": jnp.zeros((1, H), jnp.float32),
        "gamma_e": jnp.ones((1, H), jnp.float32),
        "beta_e": jnp.zeros((1, H), jnp.float32),
    }

    x_out, y_out = edge_gated_graph_conv(node_feats, edge_feats, src, dst, params)
    jax.block_until_ready((x_out, y_out))

    x_ref, y_ref = _reference(node_feats, edge_feats, src, dst, params)
    # bf16 MXU operands (f32 accumulation) -> slightly looser tolerance than an all-f32 kernel.
    np.testing.assert_allclose(np.asarray(x_out), np.asarray(x_ref), rtol=5e-2, atol=5e-2)
    np.testing.assert_allclose(np.asarray(y_out), np.asarray(y_ref), rtol=5e-2, atol=5e-2)

    print("KERNEL_OK")
</pallas_src>

<mosaic_0001>
module attributes {stable_mosaic.version = 11 : i64} {
  func.func @_edge_gated_conv_kernel(%arg0: memref<32x128xf32, #tpu.memory_space<vmem>>, %arg1: memref<64x128xf32, #tpu.memory_space<vmem>>, %arg2: memref<64x1xi32, #tpu.memory_space<vmem>>, %arg3: memref<64x1xi32, #tpu.memory_space<vmem>>, %arg4: memref<1x64xi32, #tpu.memory_space<vmem>>, %arg5: memref<128x512xbf16, #tpu.memory_space<vmem>>, %arg6: memref<128x128xbf16, #tpu.memory_space<vmem>>, %arg7: memref<1x128xf32, #tpu.memory_space<vmem>>, %arg8: memref<1x128xf32, #tpu.memory_space<vmem>>, %arg9: memref<1x128xf32, #tpu.memory_space<vmem>>, %arg10: memref<1x128xf32, #tpu.memory_space<vmem>>, %arg11: memref<32x128xf32, #tpu.memory_space<vmem>>, %arg12: memref<64x128xf32, #tpu.memory_space<vmem>>) attributes {dimension_semantics = [], scalar_prefetch = 0 : i64, scratch_operands = 0 : i64, tpu.core_type = #tpu.core_type<tc>} {
    %c0 = arith.constant 0 : index
    %c0_0 = arith.constant 0 : index
    %0 = vector.load %arg0[%c0, %c0_0] : memref<32x128xf32, #tpu.memory_space<vmem>>, vector<32x128xf32>
    %c0_1 = arith.constant 0 : index
    %c0_2 = arith.constant 0 : index
    %1 = vector.load %arg1[%c0_1, %c0_2] : memref<64x128xf32, #tpu.memory_space<vmem>>, vector<64x128xf32>
    %c0_3 = arith.constant 0 : index
    %c0_4 = arith.constant 0 : index
    %2 = vector.load %arg7[%c0_3, %c0_4] : memref<1x128xf32, #tpu.memory_space<vmem>>, vector<1x128xf32>
    %c0_5 = arith.constant 0 : index
    %c0_6 = arith.constant 0 : index
    %3 = vector.load %arg8[%c0_5, %c0_6] : memref<1x128xf32, #tpu.memory_space<vmem>>, vector<1x128xf32>
    %cst = arith.constant dense<0.000000e+00> : vector<128xf32>
    %4 = vector.multi_reduction <add>, %0, %cst [0] : vector<32x128xf32> to vector<128xf32>
    %5 = vector.shape_cast %4 : vector<128xf32> to vector<1x128xf32>
    %cst_7 = arith.constant 3.200000e+01 : f32
    %6 = vector.broadcast %cst_7 : f32 to vector<1x128xf32>
    %7 = arith.divf %5, %6 : vector<1x128xf32>
    %8 = arith.mulf %0, %0 : vector<32x128xf32>
    %cst_8 = arith.constant dense<0.000000e+00> : vector<128xf32>
    %9 = vector.multi_reduction <add>, %8, %cst_8 [0] : vector<32x128xf32> to vector<128xf32>
    %10 = vector.shape_cast %9 : vector<128xf32> to vector<1x128xf32>
    %cst_9 = arith.constant 3.200000e+01 : f32
    %11 = vector.broadcast %cst_9 : f32 to vector<1x128xf32>
    %12 = arith.divf %10, %11 : vector<1x128xf32>
    %13 = arith.mulf %7, %7 : vector<1x128xf32>
    %14 = arith.subf %12, %13 : vector<1x128xf32>
    %cst_10 = arith.constant 0.000000e+00 : f32
    %15 = vector.broadcast %cst_10 : f32 to vector<1x128xf32>
    %16 = arith.maximumf %14, %15 : vector<1x128xf32>
    %17 = vector.broadcast %7 : vector<1x128xf32> to vector<32x128xf32>
    %18 = arith.subf %0, %17 : vector<32x128xf32>
    %cst_11 = arith.constant 9.99999974E-6 : f32
    %19 = vector.broadcast %cst_11 : f32 to vector<1x128xf32>
    %20 = arith.addf %16, %19 : vector<1x128xf32>
    %21 = math.rsqrt %20 : vector<1x128xf32>
    %22 = vector.broadcast %21 : vector<1x128xf32> to vector<32x128xf32>
    %23 = arith.mulf %18, %22 : vector<32x128xf32>
    %24 = vector.broadcast %2 : vector<1x128xf32> to vector<32x128xf32>
    %25 = arith.mulf %23, %24 : vector<32x128xf32>
    %26 = vector.broadcast %3 : vector<1x128xf32> to vector<32x128xf32>
    %27 = arith.addf %25, %26 : vector<32x128xf32>
    %28 = arith.negf %27 : vector<32x128xf32>
    %29 = math.exp %28 : vector<32x128xf32>
    %cst_12 = arith.constant 1.000000e+00 : f32
    %30 = vector.broadcast %cst_12 : f32 to vector<32x128xf32>
    %31 = arith.addf %30, %29 : vector<32x128xf32>
    %32 = arith.divf %30, %31 : vector<32x128xf32>
    %33 = arith.mulf %27, %32 : vector<32x128xf32>
    %c0_13 = arith.constant 0 : index
    %c0_14 = arith.constant 0 : index
    %34 = vector.load %arg9[%c0_13, %c0_14] : memref<1x128xf32, #tpu.memory_space<vmem>>, vector<1x128xf32>
    %c0_15 = arith.constant 0 : index
    %c0_16 = arith.constant 0 : index
    %35 = vector.load %arg10[%c0_15, %c0_16] : memref<1x128xf32, #tpu.memory_space<vmem>>, vector<1x128xf32>
    %cst_17 = arith.constant dense<0.000000e+00> : vector<128xf32>
    %36 = vector.multi_reduction <add>, %1, %cst_17 [0] : vector<64x128xf32> to vector<128xf32>
    %37 = vector.shape_cast %36 : vector<128xf32> to vector<1x128xf32>
    %cst_18 = arith.constant 6.400000e+01 : f32
    %38 = vector.broadcast %cst_18 : f32 to vector<1x128xf32>
    %39 = arith.divf %37, %38 : vector<1x128xf32>
    %40 = arith.mulf %1, %1 : vector<64x128xf32>
    %cst_19 = arith.constant dense<0.000000e+00> : vector<128xf32>
    %41 = vector.multi_reduction <add>, %40, %cst_19 [0] : vector<64x128xf32> to vector<128xf32>
    %42 = vector.shape_cast %41 : vector<128xf32> to vector<1x128xf32>
    %cst_20 = arith.constant 6.400000e+01 : f32
    %43 = vector.broadcast %cst_20 : f32 to vector<1x128xf32>
    %44 = arith.divf %42, %43 : vector<1x128xf32>
    %45 = arith.mulf %39, %39 : vector<1x128xf32>
    %46 = arith.subf %44, %45 : vector<1x128xf32>
    %cst_21 = arith.constant 0.000000e+00 : f32
    %47 = vector.broadcast %cst_21 : f32 to vector<1x128xf32>
    %48 = arith.maximumf %46, %47 : vector<1x128xf32>
    %49 = vector.broadcast %39 : vector<1x128xf32> to vector<64x128xf32>
    %50 = arith.subf %1, %49 : vector<64x128xf32>
    %cst_22 = arith.constant 9.99999974E-6 : f32
    %51 = vector.broadcast %cst_22 : f32 to vector<1x128xf32>
    %52 = arith.addf %48, %51 : vector<1x128xf32>
    %53 = math.rsqrt %52 : vector<1x128xf32>
    %54 = vector.broadcast %53 : vector<1x128xf32> to vector<64x128xf32>
    %55 = arith.mulf %50, %54 : vector<64x128xf32>
    %56 = vector.broadcast %34 : vector<1x128xf32> to vector<64x128xf32>
    %57 = arith.mulf %55, %56 : vector<64x128xf32>
    %58 = vector.broadcast %35 : vector<1x128xf32> to vector<64x128xf32>
    %59 = arith.addf %57, %58 : vector<64x128xf32>
    %60 = arith.negf %59 : vector<64x128xf32>
    %61 = math.exp %60 : vector<64x128xf32>
    %cst_23 = arith.constant 1.000000e+00 : f32
    %62 = vector.broadcast %cst_23 : f32 to vector<64x128xf32>
    %63 = arith.addf %62, %61 : vector<64x128xf32>
    %64 = arith.divf %62, %63 : vector<64x128xf32>
    %65 = arith.mulf %59, %64 : vector<64x128xf32>
    %66 = arith.truncf %33 : vector<32x128xf32> to vector<32x128xbf16>
    %c0_24 = arith.constant 0 : index
    %c0_25 = arith.constant 0 : index
    %67 = vector.load %arg5[%c0_24, %c0_25] : memref<128x512xbf16, #tpu.memory_space<vmem>>, vector<128x512xbf16>
    %cst_26 = arith.constant dense<0.000000e+00> : vector<32x512xf32>
    %68 = tpu.matmul %66, %67, %cst_26 {dimension_numbers = #tpu.dot_dimension_numbers<[1], [0], [0], [1], [0, 0, 1, 1], [], []>} : vector<32x128xbf16>, vector<128x512xbf16>, vector<32x512xf32> -> vector<32x512xf32>
    %69 = vector.extract_strided_slice %68 {offsets = [0, 0], sizes = [32, 256], strides = [1, 1]} : vector<32x512xf32> to vector<32x256xf32>
    %70 = arith.truncf %69 : vector<32x256xf32> to vector<32x256xbf16>
    %71 = vector.extract_strided_slice %68 {offsets = [0, 256], sizes = [32, 128], strides = [1, 1]} : vector<32x512xf32> to vector<32x128xf32>
    %72 = arith.truncf %71 : vector<32x128xf32> to vector<32x128xbf16>
    %73 = vector.extract_strided_slice %68 {offsets = [0, 384], sizes = [32, 128], strides = [1, 1]} : vector<32x512xf32> to vector<32x128xf32>
    %74 = arith.truncf %65 : vector<64x128xf32> to vector<64x128xbf16>
    %c0_27 = arith.constant 0 : index
    %c0_28 = arith.constant 0 : index
    %75 = vector.load %arg6[%c0_27, %c0_28] : memref<128x128xbf16, #tpu.memory_space<vmem>>, vector<128x128xbf16>
    %cst_29 = arith.constant dense<0.000000e+00> : vector<64x128xf32>
    %76 = tpu.matmul %74, %75, %cst_29 {dimension_numbers = #tpu.dot_dimension_numbers<[1], [0], [0], [1], [0, 0, 1, 1], [], []>} : vector<64x128xbf16>, vector<128x128xbf16>, vector<64x128xf32> -> vector<64x128xf32>
    %77 = tpu.iota {dimensions = array<i32: 1>} : vector<64x32xi32>
    %c0_30 = arith.constant 0 : index
    %c0_31 = arith.constant 0 : index
    %78 = vector.load %arg2[%c0_30, %c0_31] : memref<64x1xi32, #tpu.memory_space<vmem>>, vector<64x1xi32>
    %79 = vector.broadcast %78 : vector<64x1xi32> to vector<64x32xi32>
    %80 = arith.cmpi eq, %77, %79 : vector<64x32xi32>
    %cst_32 = arith.constant 1.000000e+00 : f32
    %cst_33 = arith.constant 0.000000e+00 : f32
    %81 = vector.broadcast %cst_32 : f32 to vector<64x32xf32>
    %82 = vector.broadcast %cst_33 : f32 to vector<64x32xf32>
    %83 = arith.select %80, %81, %82 : vector<64x32xi1>, vector<64x32xf32>
    %84 = arith.truncf %83 : vector<64x32xf32> to vector<64x32xbf16>
    %c0_34 = arith.constant 0 : index
    %c0_35 = arith.constant 0 : index
    %85 = vector.load %arg3[%c0_34, %c0_35] : memref<64x1xi32, #tpu.memory_space<vmem>>, vector<64x1xi32>
    %86 = vector.broadcast %85 : vector<64x1xi32> to vector<64x32xi32>
    %87 = arith.cmpi eq, %77, %86 : vector<64x32xi32>
    %cst_36 = arith.constant 1.000000e+00 : f32
    %cst_37 = arith.constant 0.000000e+00 : f32
    %88 = vector.broadcast %cst_36 : f32 to vector<64x32xf32>
    %89 = vector.broadcast %cst_37 : f32 to vector<64x32xf32>
    %90 = arith.select %87, %88, %89 : vector<64x32xi1>, vector<64x32xf32>
    %91 = arith.truncf %90 : vector<64x32xf32> to vector<64x32xbf16>
    %92 = tpu.iota {dimensions = array<i32: 0>} : vector<32x64xi32>
    %c0_38 = arith.constant 0 : index
    %c0_39 = arith.constant 0 : index
    %93 = vector.load %arg4[%c0_38, %c0_39] : memref<1x64xi32, #tpu.memory_space<vmem>>, vector<1x64xi32>
    %94 = vector.broadcast %93 : vector<1x64xi32> to vector<32x64xi32>
    %95 = arith.cmpi eq, %92, %94 : vector<32x64xi32>
    %cst_40 = arith.constant 1.000000e+00 : f32
    %cst_41 = arith.constant 0.000000e+00 : f32
    %96 = vector.broadcast %cst_40 : f32 to vector<32x64xf32>
    %97 = vector.broadcast %cst_41 : f32 to vector<32x64xf32>
    %98 = arith.select %95, %96, %97 : vector<32x64xi1>, vector<32x64xf32>
    %99 = arith.truncf %98 : vector<32x64xf32> to vector<32x64xbf16>
    %cst_42 = arith.constant dense<0.000000e+00> : vector<64x256xf32>
    %100 = tpu.matmul %84, %70, %cst_42 {dimension_numbers = #tpu.dot_dimension_numbers<[1], [0], [0], [1], [0, 0, 1, 1], [], []>} : vector<64x32xbf16>, vector<32x256xbf16>, vector<64x256xf32> -> vector<64x256xf32>
    %101 = vector.extract_strided_slice %100 {offsets = [0, 0], sizes = [64, 128], strides = [1, 1]} : vector<64x256xf32> to vector<64x128xf32>
    %102 = vector.extract_strided_slice %100 {offsets = [0, 128], sizes = [64, 128], strides = [1, 1]} : vector<64x256xf32> to vector<64x128xf32>
    %cst_43 = arith.constant dense<0.000000e+00> : vector<64x128xf32>
    %103 = tpu.matmul %91, %72, %cst_43 {dimension_numbers = #tpu.dot_dimension_numbers<[1], [0], [0], [1], [0, 0, 1, 1], [], []>} : vector<64x32xbf16>, vector<32x128xbf16>, vector<64x128xf32> -> vector<64x128xf32>
    %104 = arith.addf %101, %103 : vector<64x128xf32>
    %105 = arith.addf %104, %76 : vector<64x128xf32>
    %106 = arith.negf %105 : vector<64x128xf32>
    %107 = math.exp %106 : vector<64x128xf32>
    %cst_44 = arith.constant 1.000000e+00 : f32
    %108 = vector.broadcast %cst_44 : f32 to vector<64x128xf32>
    %109 = arith.addf %108, %107 : vector<64x128xf32>
    %110 = arith.divf %108, %109 : vector<64x128xf32>
    %111 = arith.mulf %102, %110 : vector<64x128xf32>
    %112 = tpu.concatenate %111, %110 in 1 : vector<64x128xf32>, vector<64x128xf32> -> vector<64x256xf32>
    %113 = arith.truncf %112 : vector<64x256xf32> to vector<64x256xbf16>
    %cst_45 = arith.constant dense<0.000000e+00> : vector<32x256xf32>
    %114 = tpu.matmul %99, %113, %cst_45 {dimension_numbers = #tpu.dot_dimension_numbers<[1], [0], [0], [1], [0, 0, 1, 1], [], []>} : vector<32x64xbf16>, vector<64x256xbf16>, vector<32x256xf32> -> vector<32x256xf32>
    %115 = vector.extract_strided_slice %114 {offsets = [0, 0], sizes = [32, 128], strides = [1, 1]} : vector<32x256xf32> to vector<32x128xf32>
    %116 = vector.extract_strided_slice %114 {offsets = [0, 128], sizes = [32, 128], strides = [1, 1]} : vector<32x256xf32> to vector<32x128xf32>
    %cst_46 = arith.constant 9.99999997E-7 : f32
    %117 = vector.broadcast %cst_46 : f32 to vector<32x128xf32>
    %118 = arith.addf %116, %117 : vector<32x128xf32>
    %119 = tpu.reciprocal %118 {approx = true} : vector<32x128xf32> -> vector<32x128xf32>
    %120 = arith.mulf %115, %119 : vector<32x128xf32>
    %121 = arith.addf %0, %73 : vector<32x128xf32>
    %122 = arith.addf %121, %120 : vector<32x128xf32>
    %c0_47 = arith.constant 0 : index
    %c0_48 = arith.constant 0 : index
    %123 = vector.load %arg11[%c0_47, %c0_48] : memref<32x128xf32, #tpu.memory_space<vmem>>, vector<32x128xf32>
    tpu.vector_store %arg11[%c0_47, %c0_48], %122 {strides = array<i32>} : memref<32x128xf32, #tpu.memory_space<vmem>>, vector<32x128xf32>,
    %124 = arith.addf %1, %105 : vector<64x128xf32>
    %c0_49 = arith.constant 0 : index
    %c0_50 = arith.constant 0 : index
    %125 = vector.load %arg12[%c0_49, %c0_50] : memref<64x128xf32, #tpu.memory_space<vmem>>, vector<64x128xf32>
    tpu.vector_store %arg12[%c0_49, %c0_50], %124 {strides = array<i32>} : memref<64x128xf32, #tpu.memory_space<vmem>>, vector<64x128xf32>,
    return
  }
}

</mosaic_0001>

<llo_original>
// kernel: tpu_custom_call.1
$region0: #{tpu_custom_call.1}
  #allocation0 [shape = 'u32[]', space=smem, size = 0x4, offset = 0x4, fixed_abs, tag = 'smem constant byte address 0x4 - core index']
  #allocation1 [shape = 'u32[144,128]{1,0:T(1,128)}', space=vmem, size = 0x12000, scoped, tag = 'internal scratch']
  %s0 = inlined_call_operand.hbm [shape: f32[32,128], index: 0, kind: input, shape index: {}, may-alias: {0,11}]
  %s1 = inlined_call_operand.hbm [shape: f32[64,128], index: 1, kind: input, shape index: {}, may-alias: {1,12}]
  %s2 = inlined_call_operand.vmem [shape: s32[64,1], index: 2, kind: input, shape index: {}]
  %s3 = inlined_call_operand.vmem [shape: s32[64,1], index: 3, kind: input, shape index: {}]
  %s4 = inlined_call_operand.vmem [shape: s32[1,64], index: 4, kind: input, shape index: {}]
  %s5 = inlined_call_operand.vmem [shape: bf16[128,512], index: 5, kind: input, shape index: {}]
  %s6 = inlined_call_operand.vmem [shape: bf16[128,128], index: 6, kind: input, shape index: {}]
  %s7 = inlined_call_operand.vmem [shape: f32[1,128], index: 7, kind: input, shape index: {}]
  %s8 = inlined_call_operand.vmem [shape: f32[1,128], index: 8, kind: input, shape index: {}]
  %s9 = inlined_call_operand.vmem [shape: f32[1,128], index: 9, kind: input, shape index: {}]
  %s10 = inlined_call_operand.vmem [shape: f32[1,128], index: 10, kind: input, shape index: {}]
  %s11 = inlined_call_operand.hbm [shape: f32[32,128], index: 11, kind: output, shape index: {0}, may-alias: {0,11}]
  %s12 = inlined_call_operand.hbm [shape: f32[64,128], index: 12, kind: output, shape index: {1}, may-alias: {1,12}]
  %13 = xla_tuple %s11, %s12
  %s14 = sld [smem:[#allocation0]]
  $region70: #{tpu_custom_call.1} parent=0
    _
  %s16 = ssub.s32 1, %s14
  %s17 = scalar_select 0, %s16, %s14
  $region1: #{tpu_custom_call.1} parent=0
    #allocation2 [shape = 'u8[16384]{0}', space=vmem, size = 0x4000, scoped, tag = 'input window, operand 0, single buffered']
    #allocation3 [shape = 's32[1]{0}', space=sflag, size = 0x4, scoped, tag = 'scoped memory for tpu_custom_call.1']
    #allocation4 [shape = 's32[1]{0}', space=sflag, size = 0x4, scoped, tag = 'scoped memory for tpu_custom_call.1']
    #allocation5 [shape = 'u8[32768]{0}', space=vmem, size = 0x8000, scoped, tag = 'input window, operand 1, single buffered']
    #allocation6 [shape = 's32[1]{0}', space=sflag, size = 0x4, scoped, tag = 'scoped memory for tpu_custom_call.1']
    #allocation7 [shape = 'u8[16384]{0}', space=vmem, size = 0x4000, scoped, tag = 'output window, operand 0, single buffered']
    #allocation8 [shape = 'u8[32768]{0}', space=vmem, size = 0x8000, scoped, tag = 'output window, operand 1, single buffered']
    #allocation9 [shape = 's32[1]{0}', space=sflag, size = 0x4, scoped, tag = 'scoped memory for tpu_custom_call.1']
    %18 = vsyncpa [#allocation3], 0
    %19 = vsyncpa [#allocation6], 0
    %20 = vsyncpa [#allocation4], 0
    %21 = vsyncpa [#allocation9], 0
    // Predicated region
    $region2: #{tpu_custom_call.1} parent=1 // pred_check
      _
    $region3: #{tpu_custom_call.1} parent=1 // pred_check_branch
      %23 = sbr.rel (0) target = $region5
    $region4: #{tpu_custom_call.1} parent=1 // pred_region
      %s25 = ssub.s32 512, 512
      %26 = vsyncadd [#allocation3], %s25
      %s27 = sshll.u32 [#allocation2], 4
      %s28 = int_to_ptr.vmem [resolvable:$true] %s27
      %33 = dma.hbm_to_vmem [thread:$0]  %s0, 512, %s28, [#allocation3], 128, 128, 8
    $region5: #{tpu_custom_call.1} parent=1 // pred_fallthru
      _
    // Predicated region
    $region6: #{tpu_custom_call.1} parent=1 // pred_check
      _
    $region7: #{tpu_custom_call.1} parent=1 // pred_check_branch
      %35 = sbr.rel (0) target = $region9
    $region8: #{tpu_custom_call.1} parent=1 // pred_region
      %s37 = ssub.s32 1024, 1024
      %38 = vsyncadd [#allocation6], %s37
      %s39 = sshll.u32 [#allocation5], 4
      %s40 = int_to_ptr.vmem [resolvable:$true] %s39
      %45 = dma.hbm_to_vmem [thread:$0]  %s1, 1024, %s40, [#allocation6], 128, 128, 8
    $region9: #{tpu_custom_call.1} parent=1 // pred_fallthru
      _
    // Predicated region
    $region10: #{tpu_custom_call.1} parent=1 // pred_check
      _
    $region11: #{tpu_custom_call.1} parent=1 // pred_check_branch
      %47 = sbr.rel (0) target = $region13
    $region12: #{tpu_custom_call.1} parent=1 // pred_region
      _
    $region13: #{tpu_custom_call.1} parent=1 // pred_fallthru
      _
    // Predicated region
    $region14: #{tpu_custom_call.1} parent=1 // pred_check
      _
    $region15: #{tpu_custom_call.1} parent=1 // pred_check_branch
      %49 = sbr.rel (0) target = $region17
    $region16: #{tpu_custom_call.1} parent=1 // pred_region
      _
    $region17: #{tpu_custom_call.1} parent=1 // pred_fallthru
      _
    // Predicated region
    $region18: #{tpu_custom_call.1} parent=1 // pred_check
      _
    $region19: #{tpu_custom_call.1} parent=1 // pred_check_branch
      %51 = sbr.rel (0) target = $region21
    $region20: #{tpu_custom_call.1} parent=1 // pred_region
      _
    $region21: #{tpu_custom_call.1} parent=1 // pred_fallthru
      _
    // Predicated region
    $region22: #{tpu_custom_call.1} parent=1 // pred_check
      _
    $region23: #{tpu_custom_call.1} parent=1 // pred_check_branch
      %53 = sbr.rel (0) target = $region25
    $region24: #{tpu_custom_call.1} parent=1 // pred_region
      _
    $region25: #{tpu_custom_call.1} parent=1 // pred_fallthru
      _
    // Predicated region
    $region26: #{tpu_custom_call.1} parent=1 // pred_check
      _
    $region27: #{tpu_custom_call.1} parent=1 // pred_check_branch
      %55 = sbr.rel (0) target = $region29
    $region28: #{tpu_custom_call.1} parent=1 // pred_region
      _
    $region29: #{tpu_custom_call.1} parent=1 // pred_fallthru
      _
    // Predicated region
    $region30: #{tpu_custom_call.1} parent=1 // pred_check
      _
    $region31: #{tpu_custom_call.1} parent=1 // pred_check_branch
      %57 = sbr.rel (0) target = $region33
    $region32: #{tpu_custom_call.1} parent=1 // pred_region
      _
    $region33: #{tpu_custom_call.1} parent=1 // pred_fallthru
      _
    // Predicated region
    $region34: #{tpu_custom_call.1} parent=1 // pred_check
      _
    $region35: #{tpu_custom_call.1} parent=1 // pred_check_branch
      %59 = sbr.rel (0) target = $region37
    $region36: #{tpu_custom_call.1} parent=1 // pred_region
      _
    $region37: #{tpu_custom_call.1} parent=1 // pred_fallthru
      _
    // Predicated region
    $region38: #{tpu_custom_call.1} parent=1 // pred_check
      _
    $region39: #{tpu_custom_call.1} parent=1 // pred_check_branch
      %61 = sbr.rel (0) target = $region41
    $region40: #{tpu_custom_call.1} parent=1 // pred_region
      _
    $region41: #{tpu_custom_call.1} parent=1 // pred_fallthru
      _
    // Predicated region
    $region42: #{tpu_custom_call.1} parent=1 // pred_check
      _
    $region43: #{tpu_custom_call.1} parent=1 // pred_check_branch
      %63 = sbr.rel (0) target = $region45
    $region44: #{tpu_custom_call.1} parent=1 // pred_region
      _
    $region45: #{tpu_custom_call.1} parent=1 // pred_fallthru
      _
    // Predicated region
    $region46: #{tpu_custom_call.1} parent=1 // pred_check
      _
    $region47: #{tpu_custom_call.1} parent=1 // pred_check_branch
      %65 = sbr.rel (0) target = $region49
    $region48: #{tpu_custom_call.1} parent=1 // pred_region
      %66 = dma.done [#allocation3], 512
    $region49: #{tpu_custom_call.1} parent=1 // pred_fallthru
      _
    // Predicated region
    $region50: #{tpu_custom_call.1} parent=1 // pred_check
      _
    $region51: #{tpu_custom_call.1} parent=1 // pred_check_branch
      %68 = sbr.rel (0) target = $region53
    $region52: #{tpu_custom_call.1} parent=1 // pred_region
      %69 = dma.done [#allocation6], 1024
    $region53: #{tpu_custom_call.1} parent=1 // pred_fallthru
      _
    %v71 = vld [vmem:[#allocation2] sm:$0xff]
    %v72 = vld [vmem:[#allocation2 + $0x8] sm:$0xff]
    %v73 = vld [vmem:[#allocation2 + $0x10] sm:$0xff]
    %v74 = vld [vmem:[#allocation2 + $0x18] sm:$0xff]
    %v75 = vld [vmem:[#allocation5] sm:$0xff]
    %v76 = vld [vmem:[#allocation5 + $0x8] sm:$0xff]
    %v77 = vld [vmem:[#allocation5 + $0x10] sm:$0xff]
    %v78 = vld [vmem:[#allocation5 + $0x18] sm:$0xff]
    %v79 = vld [vmem:[#allocation5 + $0x20] sm:$0xff]
    %v80 = vld [vmem:[#allocation5 + $0x28] sm:$0xff]
    %v81 = vld [vmem:[#allocation5 + $0x30] sm:$0xff]
    %v82 = vld [vmem:[#allocation5 + $0x38] sm:$0xff]
    %v83 = vld [vmem:[%s7] sm:$0x1]
    %v84 = vld [vmem:[%s8] sm:$0x1]
    %v85 = vadd.f32 %v71, %v72
    %v86 = vadd.f32 %v85, %v73
    %v87 = vadd.f32 %v86, %v74
    %v88 = vrot.slane %v87, 4
    %v89 = vadd.f32 %v87, %v88
    %v90 = vrot.slane %v89, 2
    %v91 = vadd.f32 %v89, %v90
    %v92 = vrot.slane %v91, 1
    %v93 = vadd.f32 %v91, %v92
    %v94 = vrcp.pop 32.0
    %v95 = vmul.f32 %v93, %v94
    %v96 = vmul.f32 %v71, %v71
    %v97 = vmul.f32 %v72, %v72
    %v98 = vmul.f32 %v73, %v73
    %v99 = vmul.f32 %v74, %v74
    %v100 = vadd.f32 %v96, %v97
    %v101 = vadd.f32 %v100, %v98
    %v102 = vadd.f32 %v101, %v99
    %v103 = vrot.slane %v102, 4
    %v104 = vadd.f32 %v102, %v103
    %v105 = vrot.slane %v104, 2
    %v106 = vadd.f32 %v104, %v105
    %v107 = vrot.slane %v106, 1
    %v108 = vadd.f32 %v106, %v107
    %v109 = vmul.f32 %v108, %v94
    %v110 = vmul.f32 %v95, %v95
    %v111 = vsub.f32 %v109, %v110
    %v112 = vmax.f32 %v111, 0.0
    %v113 = vsub.f32 %v71, %v95
    %v114 = vsub.f32 %v72, %v95
    %v115 = vsub.f32 %v73, %v95
    %v116 = vsub.f32 %v74, %v95
    %v117 = vadd.f32 %v112, 1e-05
    %v118 = vrsqrt.pop %v117
    %v119 = vmul.f32 %v113, %v118
    %v120 = vmul.f32 %v114, %v118
    %v121 = vmul.f32 %v115, %v118
    %v122 = vmul.f32 %v116, %v118
    %v124 = vlaneseq
    %v125 = vshrl.u32 %v124, 7
    %v126 = vsub.s32 0, %v125
    %v127 = vrot.slane %v83, %v126
    %v129 = vmul.f32 %v119, %v127
    %v130 = vmul.f32 %v120, %v127
    %v131 = vmul.f32 %v121, %v127
    %v132 = vmul.f32 %v122, %v127
    %v134 = vlaneseq
    %v135 = vshrl.u32 %v134, 7
    %v136 = vsub.s32 0, %v135
    %v137 = vrot.slane %v84, %v136
    %v139 = vadd.f32 %v129, %v137
    %v140 = vadd.f32 %v130, %v137
    %v141 = vadd.f32 %v131, %v137
    %v142 = vadd.f32 %v132, %v137
    %v143 = vxor.u32 %v139, 2147483648
    %v144 = vxor.u32 %v140, 2147483648
    %v145 = vxor.u32 %v141, 2147483648
    %v146 = vxor.u32 %v142, 2147483648
    %v147 = vmul.f32 %v143, 1.442695
    %v148 = vpow.pop %v147
    %v149 = vmul.f32 %v144, 1.442695
    %v150 = vpow.pop %v149
    %v151 = vmul.f32 %v145, 1.442695
    %v152 = vpow.pop %v151
    %v153 = vmul.f32 %v146, 1.442695
    %v154 = vpow.pop %v153
    %v155 = vadd.f32 %v148, 1.0
    %v156 = vadd.f32 %v150, 1.0
    %v157 = vadd.f32 %v152, 1.0
    %v158 = vadd.f32 %v154, 1.0
    %v159 = vrcp.pop %v155
    %v160 = vmul.f32 1.0, %v159
    %v161 = vrcp.pop %v156
    %v162 = vmul.f32 1.0, %v161
    %v163 = vrcp.pop %v157
    %v164 = vmul.f32 1.0, %v163
    %v165 = vrcp.pop %v158
    %v166 = vmul.f32 1.0, %v165
    %v167 = vmul.f32 %v139, %v160
    %v168 = vmul.f32 %v140, %v162
    %v169 = vmul.f32 %v141, %v164
    %v170 = vmul.f32 %v142, %v166
    %v171 = vld [vmem:[%s9] sm:$0x1]
    %v172 = vld [vmem:[%s10] sm:$0x1]
    %v173 = vadd.f32 %v75, %v76
    %v174 = vadd.f32 %v173, %v77
    %v175 = vadd.f32 %v174, %v78
    %v176 = vadd.f32 %v175, %v79
    %v177 = vadd.f32 %v176, %v80
    %v178 = vadd.f32 %v177, %v81
    %v179 = vadd.f32 %v178, %v82
    %v180 = vrot.slane %v179, 4
    %v181 = vadd.f32 %v179, %v180
    %v182 = vrot.slane %v181, 2
    %v183 = vadd.f32 %v181, %v182
    %v184 = vrot.slane %v183, 1
    %v185 = vadd.f32 %v183, %v184
    %v186 = vrcp.pop 64.0
    %v187 = vmul.f32 %v185, %v186
    %v188 = vmul.f32 %v75, %v75
    %v189 = vmul.f32 %v76, %v76
    %v190 = vmul.f32 %v77, %v77
    %v191 = vmul.f32 %v78, %v78
    %v192 = vmul.f32 %v79, %v79
    %v193 = vmul.f32 %v80, %v80
    %v194 = vmul.f32 %v81, %v81
    %v195 = vmul.f32 %v82, %v82
    %v196 = vadd.f32 %v188, %v189
    %v197 = vadd.f32 %v196, %v190
    %v198 = vadd.f32 %v197, %v191
    %v199 = vadd.f32 %v198, %v192
    %v200 = vadd.f32 %v199, %v193
    %v201 = vadd.f32 %v200, %v194
    %v202 = vadd.f32 %v201, %v195
    %v203 = vrot.slane %v202, 4
    %v204 = vadd.f32 %v202, %v203
    %v205 = vrot.slane %v204, 2
    %v206 = vadd.f32 %v204, %v205
    %v207 = vrot.slane %v206, 1
    %v208 = vadd.f32 %v206, %v207
    %v209 = vmul.f32 %v208, %v186
    %v210 = vmul.f32 %v187, %v187
    %v211 = vsub.f32 %v209, %v210
    %v212 = vmax.f32 %v211, 0.0
    %v213 = vsub.f32 %v75, %v187
    %v214 = vsub.f32 %v76, %v187
    %v215 = vsub.f32 %v77, %v187
    %v216 = vsub.f32 %v78, %v187
    %v217 = vsub.f32 %v79, %v187
    %v218 = vsub.f32 %v80, %v187
    %v219 = vsub.f32 %v81, %v187
    %v220 = vsub.f32 %v82, %v187
    %v221 = vadd.f32 %v212, 1e-05
    %v222 = vrsqrt.pop %v221
    %v223 = vmul.f32 %v213, %v222
    %v224 = vmul.f32 %v214, %v222
    %v225 = vmul.f32 %v215, %v222
    %v226 = vmul.f32 %v216, %v222
    %v227 = vmul.f32 %v217, %v222
    %v228 = vmul.f32 %v218, %v222
    %v229 = vmul.f32 %v219, %v222
    %v230 = vmul.f32 %v220, %v222
    %v232 = vlaneseq
    %v233 = vshrl.u32 %v232, 7
    %v234 = vsub.s32 0, %v233
    %v235 = vrot.slane %v171, %v234
    %v237 = vmul.f32 %v223, %v235
    %v238 = vmul.f32 %v224, %v235
    %v239 = vmul.f32 %v225, %v235
    %v240 = vmul.f32 %v226, %v235
    %v241 = vmul.f32 %v227, %v235
    %v242 = vmul.f32 %v228, %v235
    %v243 = vmul.f32 %v229, %v235
    %v244 = vmul.f32 %v230, %v235
    %v246 = vlaneseq
    %v247 = vshrl.u32 %v246, 7
    %v248 = vsub.s32 0, %v247
    %v249 = vrot.slane %v172, %v248
    %v251 = vadd.f32 %v237, %v249
    %v252 = vadd.f32 %v238, %v249
    %v253 = vadd.f32 %v239, %v249
    %v254 = vadd.f32 %v240, %v249
    %v255 = vadd.f32 %v241, %v249
    %v256 = vadd.f32 %v242, %v249
    %v257 = vadd.f32 %v243, %v249
    %v258 = vadd.f32 %v244, %v249
    %v259 = vxor.u32 %v251, 2147483648
    %v260 = vxor.u32 %v252, 2147483648
    %v261 = vxor.u32 %v253, 2147483648
    %v262 = vxor.u32 %v254, 2147483648
    %v263 = vxor.u32 %v255, 2147483648
    %v264 = vxor.u32 %v256, 2147483648
    %v265 = vxor.u32 %v257, 2147483648
    %v266 = vxor.u32 %v258, 2147483648
    %v267 = vmul.f32 %v259, 1.442695
    %v268 = vpow.pop %v267
    %v269 = vmul.f32 %v260, 1.442695
    %v270 = vpow.pop %v269
    %v271 = vmul.f32 %v261, 1.442695
    %v272 = vpow.pop %v271
    %v273 = vmul.f32 %v262, 1.442695
    %v274 = vpow.pop %v273
    %v275 = vmul.f32 %v263, 1.442695
    %v276 = vpow.pop %v275
    %v277 = vmul.f32 %v264, 1.442695
    %v278 = vpow.pop %v277
    %v279 = vmul.f32 %v265, 1.442695
    %v280 = vpow.pop %v279
    %v281 = vmul.f32 %v266, 1.442695
    %v282 = vpow.pop %v281
    %v283 = vadd.f32 %v268, 1.0
    %v284 = vadd.f32 %v270, 1.0
    %v285 = vadd.f32 %v272, 1.0
    %v286 = vadd.f32 %v274, 1.0
    %v287 = vadd.f32 %v276, 1.0
    %v288 = vadd.f32 %v278, 1.0
    %v289 = vadd.f32 %v280, 1.0
    %v290 = vadd.f32 %v282, 1.0
    %v291 = vrcp.pop %v283
    %v292 = vmul.f32 1.0, %v291
    %v293 = vrcp.pop %v284
    %v294 = vmul.f32 1.0, %v293
    %v295 = vrcp.pop %v285
    %v296 = vmul.f32 1.0, %v295
    %v297 = vrcp.pop %v286
    %v298 = vmul.f32 1.0, %v297
    %v299 = vrcp.pop %v287
    %v300 = vmul.f32 1.0, %v299
    %v301 = vrcp.pop %v288
    %v302 = vmul.f32 1.0, %v301
    %v303 = vrcp.pop %v289
    %v304 = vmul.f32 1.0, %v303
    %v305 = vrcp.pop %v290
    %v306 = vmul.f32 1.0, %v305
    %v307 = vmul.f32 %v251, %v292
    %v308 = vmul.f32 %v252, %v294
    %v309 = vmul.f32 %v253, %v296
    %v310 = vmul.f32 %v254, %v298
    %v311 = vmul.f32 %v255, %v300
    %v312 = vmul.f32 %v256, %v302
    %v313 = vmul.f32 %v257, %v304
    %v314 = vmul.f32 %v258, %v306
    %v315 = vpack.c.bf16 %v168, %v167
    %v316 = vpack.c.bf16 %v170, %v169
    %v317 = vld [vmem:[%s5] sm:$0xff]
    %v318 = vld [vmem:[%s5 + $0x8] sm:$0xff]
    %v319 = vld [vmem:[%s5 + $0x10] sm:$0xff]
    %v320 = vld [vmem:[%s5 + $0x18] sm:$0xff]
    %v321 = vld [vmem:[%s5 + $0x20] sm:$0xff]
    %v322 = vld [vmem:[%s5 + $0x28] sm:$0xff]
    %v323 = vld [vmem:[%s5 + $0x30] sm:$0xff]
    %v324 = vld [vmem:[%s5 + $0x38] sm:$0xff]
    %v325 = vld [vmem:[%s5 + $0x40] sm:$0xff]
    %v326 = vld [vmem:[%s5 + $0x48] sm:$0xff]
    %v327 = vld [vmem:[%s5 + $0x50] sm:$0xff]
    %v328 = vld [vmem:[%s5 + $0x58] sm:$0xff]
    %v329 = vld [vmem:[%s5 + $0x60] sm:$0xff]
    %v330 = vld [vmem:[%s5 + $0x68] sm:$0xff]
    %v331 = vld [vmem:[%s5 + $0x70] sm:$0xff]
    %v332 = vld [vmem:[%s5 + $0x78] sm:$0xff]
    %v333 = vld [vmem:[%s5 + $0x80] sm:$0xff]
    %v334 = vld [vmem:[%s5 + $0x88] sm:$0xff]
    %v335 = vld [vmem:[%s5 + $0x90] sm:$0xff]
    %v336 = vld [vmem:[%s5 + $0x98] sm:$0xff]
    %v337 = vld [vmem:[%s5 + $0xa0] sm:$0xff]
    %v338 = vld [vmem:[%s5 + $0xa8] sm:$0xff]
    %v339 = vld [vmem:[%s5 + $0xb0] sm:$0xff]
    %v340 = vld [vmem:[%s5 + $0xb8] sm:$0xff]
    %v341 = vld [vmem:[%s5 + $0xc0] sm:$0xff]
    %v342 = vld [vmem:[%s5 + $0xc8] sm:$0xff]
    %v343 = vld [vmem:[%s5 + $0xd0] sm:$0xff]
    %v344 = vld [vmem:[%s5 + $0xd8] sm:$0xff]
    %v345 = vld [vmem:[%s5 + $0xe0] sm:$0xff]
    %v346 = vld [vmem:[%s5 + $0xe8] sm:$0xff]
    %v347 = vld [vmem:[%s5 + $0xf0] sm:$0xff]
    %v348 = vld [vmem:[%s5 + $0xf8] sm:$0xff]
    %v381 = vunpack.c.l.b16 %v317
    %v382 = vunpack.c.h.b16 %v317
    %v383 = vunpack.c.l.b16 %v318
    %v384 = vunpack.c.h.b16 %v318
    %v385 = vunpack.c.l.b16 %v319
    %v386 = vunpack.c.h.b16 %v319
    %v387 = vunpack.c.l.b16 %v320
    %v388 = vunpack.c.h.b16 %v320
    %v389 = vunpack.c.l.b16 %v321
    %v390 = vunpack.c.h.b16 %v321
    %v391 = vunpack.c.l.b16 %v322
    %v392 = vunpack.c.h.b16 %v322
    %v393 = vunpack.c.l.b16 %v323
    %v394 = vunpack.c.h.b16 %v323
    %v395 = vunpack.c.l.b16 %v324
    %v396 = vunpack.c.h.b16 %v324
    %v397 = vunpack.c.l.b16 %v325
    %v398 = vunpack.c.h.b16 %v325
    %v399 = vunpack.c.l.b16 %v326
    %v400 = vunpack.c.h.b16 %v326
    %v401 = vunpack.c.l.b16 %v327
    %v402 = vunpack.c.h.b16 %v327
    %v403 = vunpack.c.l.b16 %v328
    %v404 = vunpack.c.h.b16 %v328
    %v405 = vunpack.c.l.b16 %v329
    %v406 = vunpack.c.h.b16 %v329
    %v407 = vunpack.c.l.b16 %v330
    %v408 = vunpack.c.h.b16 %v330
    %v409 = vunpack.c.l.b16 %v331
    %v410 = vunpack.c.h.b16 %v331
    %v411 = vunpack.c.l.b16 %v332
    %v412 = vunpack.c.h.b16 %v332
    %v413 = vunpack.c.l.b16 %v333
    %v414 = vunpack.c.h.b16 %v333
    %v415 = vunpack.c.l.b16 %v334
    %v416 = vunpack.c.h.b16 %v334
    %v417 = vunpack.c.l.b16 %v335
    %v418 = vunpack.c.h.b16 %v335
    %v419 = vunpack.c.l.b16 %v336
    %v420 = vunpack.c.h.b16 %v336
    %v421 = vunpack.c.l.b16 %v337
    %v422 = vunpack.c.h.b16 %v337
    %v423 = vunpack.c.l.b16 %v338
    %v424 = vunpack.c.h.b16 %v338
    %v425 = vunpack.c.l.b16 %v339
    %v426 = vunpack.c.h.b16 %v339
    %v427 = vunpack.c.l.b16 %v340
    %v428 = vunpack.c.h.b16 %v340
    %v429 = vunpack.c.l.b16 %v341
    %v430 = vunpack.c.h.b16 %v341
    %v431 = vunpack.c.l.b16 %v342
    %v432 = vunpack.c.h.b16 %v342
    %v433 = vunpack.c.l.b16 %v343
    %v434 = vunpack.c.h.b16 %v343
    %v435 = vunpack.c.l.b16 %v344
    %v436 = vunpack.c.h.b16 %v344
    %v437 = vunpack.c.l.b16 %v345
    %v438 = vunpack.c.h.b16 %v345
    %v439 = vunpack.c.l.b16 %v346
    %v440 = vunpack.c.h.b16 %v346
    %v441 = vunpack.c.l.b16 %v347
    %v442 = vunpack.c.h.b16 %v347
    %v443 = vunpack.c.l.b16 %v348
    %v444 = vunpack.c.h.b16 %v348
    %v445 = vpack.c.b16 %v385, %v381
    %v446 = vpack.c.b16 %v386, %v382
    %v447 = vpack.c.b16 %v387, %v383
    %v448 = vpack.c.b16 %v388, %v384
    %v449 = vpack.c.b16 %v393, %v389
    %v450 = vpack.c.b16 %v394, %v390
    %v451 = vpack.c.b16 %v395, %v391
    %v452 = vpack.c.b16 %v396, %v392
    %v453 = vpack.c.b16 %v401, %v397
    %v454 = vpack.c.b16 %v402, %v398
    %v455 = vpack.c.b16 %v403, %v399
    %v456 = vpack.c.b16 %v404, %v400
    %v457 = vpack.c.b16 %v409, %v405
    %v458 = vpack.c.b16 %v410, %v406
    %v459 = vpack.c.b16 %v411, %v407
    %v460 = vpack.c.b16 %v412, %v408
    %v461 = vpack.c.b16 %v417, %v413
    %v462 = vpack.c.b16 %v418, %v414
    %v463 = vpack.c.b16 %v419, %v415
    %v464 = vpack.c.b16 %v420, %v416
    %v465 = vpack.c.b16 %v425, %v421
    %v466 = vpack.c.b16 %v426, %v422
    %v467 = vpack.c.b16 %v427, %v423
    %v468 = vpack.c.b16 %v428, %v424
    %v469 = vpack.c.b16 %v433, %v429
    %v470 = vpack.c.b16 %v434, %v430
    %v471 = vpack.c.b16 %v435, %v431
    %v472 = vpack.c.b16 %v436, %v432
    %v473 = vpack.c.b16 %v441, %v437
    %v474 = vpack.c.b16 %v442, %v438
    %v475 = vpack.c.b16 %v443, %v439
    %v476 = vpack.c.b16 %v444, %v440
    %509 = vmatprep.subr.bf16.mxu0 %v474
    %510 = vmatpush1.bf16.msra.mxu0 %v473
    %511 = vmatprep.subr.bf16.mxu0 %v470
    %512 = vmatpush1.bf16.msra.mxu0 %v469
    %513 = vmatprep.subr.bf16.mxu0 %v466
    %514 = vmatpush1.bf16.msra.mxu0 %v465
    %515 = vmatprep.subr.bf16.mxu0 %v462
    %516 = vmatpush1.bf16.msra.mxu0 %v461
    %517 = vmatprep.subr.bf16.mxu0 %v458
    %518 = vmatpush1.bf16.msra.mxu0 %v457
    %519 = vmatprep.subr.bf16.mxu0 %v454
    %520 = vmatpush1.bf16.msra.mxu0 %v453
    %521 = vmatprep.subr.bf16.mxu0 %v450
    %522 = vmatpush1.bf16.msra.mxu0 %v449
    %523 = vmatprep.subr.bf16.mxu0 %v446
    %524 = vmatpush1.bf16.msra.mxu0 %v445
    %525 = vmatprep.subr.bf16.mxu0 0
    %526 = vmatpush2.bf16.msra.mxu0 0
    %527 = vmatprep.subr.bf16.mxu0 0
    %528 = vmatpush2.bf16.msra.mxu0 0
    %529 = vmatprep.subr.bf16.mxu0 0
    %530 = vmatpush2.bf16.msra.mxu0 0
    %531 = vmatprep.subr.bf16.mxu0 0
    %532 = vmatpush2.bf16.msra.mxu0 0
    %533 = vmatprep.subr.bf16.mxu0 0
    %534 = vmatpush2.bf16.msra.mxu0 0
    %535 = vmatprep.subr.bf16.mxu0 0
    %536 = vmatpush2.bf16.msra.mxu0 0
    %537 = vmatprep.subr.bf16.mxu0 0
    %538 = vmatpush2.bf16.msra.mxu0 0
    %539 = vmatprep.subr.bf16.mxu0 0
    %540 = vmatpush2.bf16.msra.mxu0 0
    %541 = vmatprep.mubr.bf16.mxu0 0
    %542 = vmatmul.mubr.bf16.gmra.mxu0 %v315
    %v543 = vpop.f32.mrf.mxu0
    %v544 = vadd.f32 0.0, %v543
    %v545 = vpop.f32.mrf.mxu0
    %v546 = vadd.f32 0.0, %v545
    %v547 = vpop.f32.mrf.mxu0
    %v548 = vadd.f32 0.0, %v547
    %v549 = vpop.f32.mrf.mxu0
    %v550 = vadd.f32 0.0, %v549
    %551 = vmatprep.mubr.bf16.mxu0 0
    %552 = vmatmul.mubr.bf16.gmra.mxu0 %v316
    %v553 = vpop.f32.mrf.mxu0
    %v554 = vadd.f32 0.0, %v553
    %v555 = vpop.f32.mrf.mxu0
    %v556 = vadd.f32 0.0, %v555
    %v557 = vpop.f32.mrf.mxu0
    %v558 = vadd.f32 0.0, %v557
    %v559 = vpop.f32.mrf.mxu0
    %v560 = vadd.f32 0.0, %v559
    %561 = vdwg.mxu0
    %562 = vmatprep.subr.bf16.mxu0 %v476
    %563 = vmatpush1.bf16.msra.mxu0 %v475
    %564 = vmatprep.subr.bf16.mxu0 %v472
    %565 = vmatpush1.bf16.msra.mxu0 %v471
    %566 = vmatprep.subr.bf16.mxu0 %v468
    %567 = vmatpush1.bf16.msra.mxu0 %v467
    %568 = vmatprep.subr.bf16.mxu0 %v464
    %569 = vmatpush1.bf16.msra.mxu0 %v463
    %570 = vmatprep.subr.bf16.mxu0 %v460
    %571 = vmatpush1.bf16.msra.mxu0 %v459
    %572 = vmatprep.subr.bf16.mxu0 %v456
    %573 = vmatpush1.bf16.msra.mxu0 %v455
    %574 = vmatprep.subr.bf16.mxu0 %v452
    %575 = vmatpush1.bf16.msra.mxu0 %v451
    %576 = vmatprep.subr.bf16.mxu0 %v448
    %577 = vmatpush1.bf16.msra.mxu0 %v447
    %578 = vmatprep.subr.bf16.mxu0 0
    %579 = vmatpush2.bf16.msra.mxu0 0
    %580 = vmatprep.subr.bf16.mxu0 0
    %581 = vmatpush2.bf16.msra.mxu0 0
    %582 = vmatprep.subr.bf16.mxu0 0
    %583 = vmatpush2.bf16.msra.mxu0 0
    %584 = vmatprep.subr.bf16.mxu0 0
    %585 = vmatpush2.bf16.msra.mxu0 0
    %586 = vmatprep.subr.bf16.mxu0 0
    %587 = vmatpush2.bf16.msra.mxu0 0
    %588 = vmatprep.subr.bf16.mxu0 0
    %589 = vmatpush2.bf16.msra.mxu0 0
    %590 = vmatprep.subr.bf16.mxu0 0
    %591 = vmatpush2.bf16.msra.mxu0 0
    %592 = vmatprep.subr.bf16.mxu0 0
    %593 = vmatpush2.bf16.msra.mxu0 0
    %594 = vmatprep.mubr.bf16.mxu0 0
    %595 = vmatmul.mubr.bf16.gmra.mxu0 %v315
    %v596 = vpop.f32.mrf.mxu0
    %v597 = vadd.f32 0.0, %v596
    %v598 = vpop.f32.mrf.mxu0
    %v599 = vadd.f32 0.0, %v598
    %v600 = vpop.f32.mrf.mxu0
    %v601 = vadd.f32 0.0, %v600
    %v602 = vpop.f32.mrf.mxu0
    %v603 = vadd.f32 0.0, %v602
    %604 = vmatprep.mubr.bf16.mxu0 0
    %605 = vmatmul.mubr.bf16.gmra.mxu0 %v316
    %v606 = vpop.f32.mrf.mxu0
    %v607 = vadd.f32 0.0, %v606
    %v608 = vpop.f32.mrf.mxu0
    %v609 = vadd.f32 0.0, %v608
    %v610 = vpop.f32.mrf.mxu0
    %v611 = vadd.f32 0.0, %v610
    %v612 = vpop.f32.mrf.mxu0
    %v613 = vadd.f32 0.0, %v612
    %614 = vdwg.mxu0
    %v615 = vpack.c.bf16 %v548, %v544
    %v616 = vpack.c.bf16 %v550, %v546
    %v617 = vpack.c.bf16 %v558, %v554
    %v618 = vpack.c.bf16 %v560, %v556
    %v619 = vpack.c.bf16 %v601, %v597
    %v620 = vpack.c.bf16 %v611, %v607
    %v621 = vpack.c.bf16 %v308, %v307
    %v622 = vpack.c.bf16 %v310, %v309
    %v623 = vpack.c.bf16 %v312, %v311
    %v624 = vpack.c.bf16 %v314, %v313
    %v625 = vld [vmem:[%s6] sm:$0xf]
    %v626 = vld [vmem:[%s6 + $0x4] sm:$0xf]
    %v627 = vld [vmem:[%s6 + $0x8] sm:$0xf]
    %v628 = vld [vmem:[%s6 + $0xc] sm:$0xf]
    %v629 = vld [vmem:[%s6 + $0x10] sm:$0xf]
    %v630 = vld [vmem:[%s6 + $0x14] sm:$0xf]
    %v631 = vld [vmem:[%s6 + $0x18] sm:$0xf]
    %v632 = vld [vmem:[%s6 + $0x1c] sm:$0xf]
    %v633 = vld [vmem:[%s6 + $0x20] sm:$0xf]
    %v634 = vld [vmem:[%s6 + $0x24] sm:$0xf]
    %v635 = vld [vmem:[%s6 + $0x28] sm:$0xf]
    %v636 = vld [vmem:[%s6 + $0x2c] sm:$0xf]
    %v637 = vld [vmem:[%s6 + $0x30] sm:$0xf]
    %v638 = vld [vmem:[%s6 + $0x34] sm:$0xf]
    %v639 = vld [vmem:[%s6 + $0x38] sm:$0xf]
    %v640 = vld [vmem:[%s6 + $0x3c] sm:$0xf]
    %v657 = vunpack.c.l.b16 %v625
    %v658 = vunpack.c.l.b16 %v626
    %v659 = vunpack.c.l.b16 %v627
    %v660 = vunpack.c.l.b16 %v628
    %v661 = vunpack.c.l.b16 %v629
    %v662 = vunpack.c.l.b16 %v630
    %v663 = vunpack.c.l.b16 %v631
    %v664 = vunpack.c.l.b16 %v632
    %v665 = vunpack.c.l.b16 %v633
    %v666 = vunpack.c.l.b16 %v634
    %v667 = vunpack.c.l.b16 %v635
    %v668 = vunpack.c.l.b16 %v636
    %v669 = vunpack.c.l.b16 %v637
    %v670 = vunpack.c.l.b16 %v638
    %v671 = vunpack.c.l.b16 %v639
    %v672 = vunpack.c.l.b16 %v640
    %v673 = vpack.c.b16 %v658, %v657
    %v674 = vpack.c.b16 %v660, %v659
    %v675 = vpack.c.b16 %v662, %v661
    %v676 = vpack.c.b16 %v664, %v663
    %v677 = vpack.c.b16 %v666, %v665
    %v678 = vpack.c.b16 %v668, %v667
    %v679 = vpack.c.b16 %v670, %v669
    %v680 = vpack.c.b16 %v672, %v671
    %689 = vmatprep.subr.bf16.mxu0 0
    %690 = vmatpush1.bf16.msra.mxu0 %v680
    %691 = vmatprep.subr.bf16.mxu0 0
    %692 = vmatpush1.bf16.msra.mxu0 %v679
    %693 = vmatprep.subr.bf16.mxu0 0
    %694 = vmatpush1.bf16.msra.mxu0 %v678
    %695 = vmatprep.subr.bf16.mxu0 0
    %696 = vmatpush1.bf16.msra.mxu0 %v677
    %697 = vmatprep.subr.bf16.mxu0 0
    %698 = vmatpush1.bf16.msra.mxu0 %v676
    %699 = vmatprep.subr.bf16.mxu0 0
    %700 = vmatpush1.bf16.msra.mxu0 %v675
    %701 = vmatprep.subr.bf16.mxu0 0
    %702 = vmatpush1.bf16.msra.mxu0 %v674
    %703 = vmatprep.subr.bf16.mxu0 0
    %704 = vmatpush1.bf16.msra.mxu0 %v673
    %705 = vmatprep.subr.bf16.mxu0 0
    %706 = vmatpush2.bf16.msra.mxu0 0
    %707 = vmatprep.subr.bf16.mxu0 0
    %708 = vmatpush2.bf16.msra.mxu0 0
    %709 = vmatprep.subr.bf16.mxu0 0
    %710 = vmatpush2.bf16.msra.mxu0 0
    %711 = vmatprep.subr.bf16.mxu0 0
    %712 = vmatpush2.bf16.msra.mxu0 0
    %713 = vmatprep.subr.bf16.mxu0 0
    %714 = vmatpush2.bf16.msra.mxu0 0
    %715 = vmatprep.subr.bf16.mxu0 0
    %716 = vmatpush2.bf16.msra.mxu0 0
    %717 = vmatprep.subr.bf16.mxu0 0
    %718 = vmatpush2.bf16.msra.mxu0 0
    %719 = vmatprep.subr.bf16.mxu0 0
    %720 = vmatpush2.bf16.msra.mxu0 0
    %721 = vmatprep.mubr.bf16.mxu0 0
    %722 = vmatmul.mubr.bf16.gmra.mxu0 %v621
    %v723 = vpop.f32.mrf.mxu0
    %v724 = vadd.f32 0.0, %v723
    %v725 = vpop.f32.mrf.mxu0
    %v726 = vpop.f32.mrf.mxu0
    %v727 = vadd.f32 0.0, %v726
    %v728 = vpop.f32.mrf.mxu0
    %729 = vmatprep.mubr.bf16.mxu0 0
    %730 = vmatmul.mubr.bf16.gmra.mxu0 %v622
    %v731 = vpop.f32.mrf.mxu0
    %v732 = vadd.f32 0.0, %v731
    %v733 = vpop.f32.mrf.mxu0
    %v734 = vpop.f32.mrf.mxu0
    %v735 = vadd.f32 0.0, %v734
    %v736 = vpop.f32.mrf.mxu0
    %737 = vmatprep.mubr.bf16.mxu0 0
    %738 = vmatmul.mubr.bf16.gmra.mxu0 %v623
    %v739 = vpop.f32.mrf.mxu0
    %v740 = vadd.f32 0.0, %v739
    %v741 = vpop.f32.mrf.mxu0
    %v742 = vpop.f32.mrf.mxu0
    %v743 = vadd.f32 0.0, %v742
    %v744 = vpop.f32.mrf.mxu0
    %745 = vmatprep.mubr.bf16.mxu0 0
    %746 = vmatmul.mubr.bf16.gmra.mxu0 %v624
    %v747 = vpop.f32.mrf.mxu0
    %v748 = vadd.f32 0.0, %v747
    %v749 = vpop.f32.mrf.mxu0
    %v750 = vpop.f32.mrf.mxu0
    %v751 = vadd.f32 0.0, %v750
    %v752 = vpop.f32.mrf.mxu0
    %753 = vdwg.mxu0
    %v754 = vlaneseq
    %v755 = vand.u32 %v754, 127
    %v756 = vld [vmem:[%s2] sm:$0xff]
    %v757 = vld [vmem:[%s2 + $0x8] sm:$0xff]
    %v758 = vld [vmem:[%s2 + $0x10] sm:$0xff]
    %v759 = vld [vmem:[%s2 + $0x18] sm:$0xff]
    %v760 = vld [vmem:[%s2 + $0x20] sm:$0xff]
    %v761 = vld [vmem:[%s2 + $0x28] sm:$0xff]
    %v762 = vld [vmem:[%s2 + $0x30] sm:$0xff]
    %v763 = vld [vmem:[%s2 + $0x38] sm:$0xff]
    %764 = vset.pattern.permute.xlu0 0
    %765 = vperm.xlu0 %764, %v756
    %v766 = vpop.permute.xlu0 %765
    %767 = vset.pattern.permute.xlu0 0
    %768 = vperm.xlu0 %767, %v757
    %v769 = vpop.permute.xlu0 %768
    %770 = vset.pattern.permute.xlu0 0
    %771 = vperm.xlu0 %770, %v758
    %v772 = vpop.permute.xlu0 %771
    %773 = vset.pattern.permute.xlu0 0
    %774 = vperm.xlu0 %773, %v759
    %v775 = vpop.permute.xlu0 %774
    %776 = vset.pattern.permute.xlu0 0
    %777 = vperm.xlu0 %776, %v760
    %v778 = vpop.permute.xlu0 %777
    %779 = vset.pattern.permute.xlu0 0
    %780 = vperm.xlu0 %779, %v761
    %v781 = vpop.permute.xlu0 %780
    %782 = vset.pattern.permute.xlu0 0
    %783 = vperm.xlu0 %782, %v762
    %v784 = vpop.permute.xlu0 %783
    %785 = vset.pattern.permute.xlu0 0
    %786 = vperm.xlu0 %785, %v763
    %v787 = vpop.permute.xlu0 %786
    %vm788 = vcmp.eq.s32.totalorder %v755, %v766
    %vm789 = vcmp.eq.s32.totalorder %v755, %v769
    %vm790 = vcmp.eq.s32.totalorder %v755, %v772
    %vm791 = vcmp.eq.s32.totalorder %v755, %v775
    %vm792 = vcmp.eq.s32.totalorder %v755, %v778
    %vm793 = vcmp.eq.s32.totalorder %v755, %v781
    %vm794 = vcmp.eq.s32.totalorder %v755, %v784
    %vm795 = vcmp.eq.s32.totalorder %v755, %v787
    %v796 = vsel %vm788, 1.0, 0.0
    %v797 = vsel %vm789, 1.0, 0.0
    %v798 = vsel %vm790, 1.0, 0.0
    %v799 = vsel %vm791, 1.0, 0.0
    %v800 = vsel %vm792, 1.0, 0.0
    %v801 = vsel %vm793, 1.0, 0.0
    %v802 = vsel %vm794, 1.0, 0.0
    %v803 = vsel %vm795, 1.0, 0.0
    %v804 = vpack.c.bf16 %v797, %v796
    %v805 = vpack.c.bf16 %v799, %v798
    %v806 = vpack.c.bf16 %v801, %v800
    %v807 = vpack.c.bf16 %v803, %v802
    %v808 = vld [vmem:[%s3] sm:$0xff]
    %v809 = vld [vmem:[%s3 + $0x8] sm:$0xff]
    %v810 = vld [vmem:[%s3 + $0x10] sm:$0xff]
    %v811 = vld [vmem:[%s3 + $0x18] sm:$0xff]
    %v812 = vld [vmem:[%s3 + $0x20] sm:$0xff]
    %v813 = vld [vmem:[%s3 + $0x28] sm:$0xff]
    %v814 = vld [vmem:[%s3 + $0x30] sm:$0xff]
    %v815 = vld [vmem:[%s3 + $0x38] sm:$0xff]
    %816 = vset.pattern.permute.xlu0 0
    %817 = vperm.xlu0 %816, %v808
    %v818 = vpop.permute.xlu0 %817
    %819 = vset.pattern.permute.xlu0 0
    %820 = vperm.xlu0 %819, %v809
    %v821 = vpop.permute.xlu0 %820
    %822 = vset.pattern.permute.xlu0 0
    %823 = vperm.xlu0 %822, %v810
    %v824 = vpop.permute.xlu0 %823
    %825 = vset.pattern.permute.xlu0 0
    %826 = vperm.xlu0 %825, %v811
    %v827 = vpop.permute.xlu0 %826
    %828 = vset.pattern.permute.xlu0 0
    %829 = vperm.xlu0 %828, %v812
    %v830 = vpop.permute.xlu0 %829
    %831 = vset.pattern.permute.xlu0 0
    %832 = vperm.xlu0 %831, %v813
    %v833 = vpop.permute.xlu0 %832
    %834 = vset.pattern.permute.xlu0 0
    %835 = vperm.xlu0 %834, %v814
    %v836 = vpop.permute.xlu0 %835
    %837 = vset.pattern.permute.xlu0 0
    %838 = vperm.xlu0 %837, %v815
    %v839 = vpop.permute.xlu0 %838
    %vm840 = vcmp.eq.s32.totalorder %v755, %v818
    %vm841 = vcmp.eq.s32.totalorder %v755, %v821
    %vm842 = vcmp.eq.s32.totalorder %v755, %v824
    %vm843 = vcmp.eq.s32.totalorder %v755, %v827
    %vm844 = vcmp.eq.s32.totalorder %v755, %v830
    %vm845 = vcmp.eq.s32.totalorder %v755, %v833
    %vm846 = vcmp.eq.s32.totalorder %v755, %v836
    %vm847 = vcmp.eq.s32.totalorder %v755, %v839
    %v848 = vsel %vm840, 1.0, 0.0
    %v849 = vsel %vm841, 1.0, 0.0
    %v850 = vsel %vm842, 1.0, 0.0
    %v851 = vsel %vm843, 1.0, 0.0
    %v852 = vsel %vm844, 1.0, 0.0
    %v853 = vsel %vm845, 1.0, 0.0
    %v854 = vsel %vm846, 1.0, 0.0
    %v855 = vsel %vm847, 1.0, 0.0
    %v856 = vpack.c.bf16 %v849, %v848
    %v857 = vpack.c.bf16 %v851, %v850
    %v858 = vpack.c.bf16 %v853, %v852
    %v859 = vpack.c.bf16 %v855, %v854
    %v860 = vlaneseq
    %v861 = vshrl.u32 %v860, 7
    %v862 = vadd.s32 %v861, 8
    %v863 = vadd.s32 %v861, 16
    %v864 = vadd.s32 %v861, 24
    %v865 = vld [vmem:[%s4] sm:$0x1]
    %v866 = vlaneseq
    %v867 = vshrl.u32 %v866, 7
    %v868 = vsub.s32 0, %v867
    %v869 = vrot.slane %v865, %v868
    %vm870 = vcmp.eq.s32.totalorder %v861, %v869
    %vm871 = vcmp.eq.s32.totalorder %v862, %v869
    %vm872 = vcmp.eq.s32.totalorder %v863, %v869
    %vm873 = vcmp.eq.s32.totalorder %v864, %v869
    %v874 = vsel %vm870, 1.0, 0.0
    %v875 = vsel %vm871, 1.0, 0.0
    %v876 = vsel %vm872, 1.0, 0.0
    %v877 = vsel %vm873, 1.0, 0.0
    %v878 = vpack.c.bf16 %v875, %v874
    %v879 = vpack.c.bf16 %v877, %v876
    %vm880 = vcmask 261120
    %v882 = vsel %vm880, %v804, 0
    %v885 = vsel %vm880, %v805, 0
    %v888 = vsel %vm880, %v806, 0
    %v891 = vsel %vm880, %v807, 0
    %893 = vmatprep.subr.bf16.mxu0 0
    %894 = vmatpush1.bf16.msra.mxu0 0
    %895 = vmatprep.subr.bf16.mxu0 0
    %896 = vmatpush1.bf16.msra.mxu0 0
    %897 = vmatprep.subr.bf16.mxu0 0
    %898 = vmatpush1.bf16.msra.mxu0 0
    %899 = vmatprep.subr.bf16.mxu0 0
    %900 = vmatpush1.bf16.msra.mxu0 0
    %901 = vmatprep.subr.bf16.mxu0 0
    %902 = vmatpush1.bf16.msra.mxu0 0
    %903 = vmatprep.subr.bf16.mxu0 0
    %904 = vmatpush1.bf16.msra.mxu0 0
    %905 = vmatprep.subr.bf16.mxu0 %v618
    %906 = vmatpush1.bf16.msra.mxu0 %v617
    %907 = vmatprep.subr.bf16.mxu0 %v616
    %908 = vmatpush1.bf16.msra.mxu0 %v615
    %909 = vmatprep.subr.bf16.mxu0 0
    %910 = vmatpush2.bf16.msra.mxu0 0
    %911 = vmatprep.subr.bf16.mxu0 0
    %912 = vmatpush2.bf16.msra.mxu0 0
    %913 = vmatprep.subr.bf16.mxu0 0
    %914 = vmatpush2.bf16.msra.mxu0 0
    %915 = vmatprep.subr.bf16.mxu0 0
    %916 = vmatpush2.bf16.msra.mxu0 0
    %917 = vmatprep.subr.bf16.mxu0 0
    %918 = vmatpush2.bf16.msra.mxu0 0
    %919 = vmatprep.subr.bf16.mxu0 0
    %920 = vmatpush2.bf16.msra.mxu0 0
    %921 = vmatprep.subr.bf16.mxu0 0
    %922 = vmatpush2.bf16.msra.mxu0 0
    %923 = vmatprep.subr.bf16.mxu0 0
    %924 = vmatpush2.bf16.msra.mxu0 0
    %925 = vmatprep.mubr.bf16.mxu0 0
    %926 = vmatmul.mubr.bf16.gmra.mxu0 %v882
    %v927 = vpop.f32.mrf.mxu0
    %v928 = vadd.f32 0.0, %v927
    %v929 = vpop.f32.mrf.mxu0
    %v930 = vadd.f32 0.0, %v929
    %v931 = vpop.f32.mrf.mxu0
    %v932 = vadd.f32 0.0, %v931
    %v933 = vpop.f32.mrf.mxu0
    %v934 = vadd.f32 0.0, %v933
    %935 = vmatprep.mubr.bf16.mxu0 0
    %936 = vmatmul.mubr.bf16.gmra.mxu0 %v885
    %v937 = vpop.f32.mrf.mxu0
    %v938 = vadd.f32 0.0, %v937
    %v939 = vpop.f32.mrf.mxu0
    %v940 = vadd.f32 0.0, %v939
    %v941 = vpop.f32.mrf.mxu0
    %v942 = vadd.f32 0.0, %v941
    %v943 = vpop.f32.mrf.mxu0
    %v944 = vadd.f32 0.0, %v943
    %945 = vmatprep.mubr.bf16.mxu0 0
    %946 = vmatmul.mubr.bf16.gmra.mxu0 %v888
    %v947 = vpop.f32.mrf.mxu0
    %v948 = vadd.f32 0.0, %v947
    %v949 = vpop.f32.mrf.mxu0
    %v950 = vadd.f32 0.0, %v949
    %v951 = vpop.f32.mrf.mxu0
    %v952 = vadd.f32 0.0, %v951
    %v953 = vpop.f32.mrf.mxu0
    %v954 = vadd.f32 0.0, %v953
    %955 = vmatprep.mubr.bf16.mxu0 0
    %956 = vmatmul.mubr.bf16.gmra.mxu0 %v891
    %v957 = vpop.f32.mrf.mxu0
    %v958 = vadd.f32 0.0, %v957
    %v959 = vpop.f32.mrf.mxu0
    %v960 = vadd.f32 0.0, %v959
    %v961 = vpop.f32.mrf.mxu0
    %v962 = vadd.f32 0.0, %v961
    %v963 = vpop.f32.mrf.mxu0
    %v964 = vadd.f32 0.0, %v963
    %965 = vdwg.mxu0
    %v967 = vsel %vm880, %v856, 0
    %v970 = vsel %vm880, %v857, 0
    %v973 = vsel %vm880, %v858, 0
    %v976 = vsel %vm880, %v859, 0
    %978 = vmatprep.subr.bf16.mxu0 0
    %979 = vmatpush1.bf16.msra.mxu0 0
    %980 = vmatprep.subr.bf16.mxu0 0
    %981 = vmatpush1.bf16.msra.mxu0 0
    %982 = vmatprep.subr.bf16.mxu0 0
    %983 = vmatpush1.bf16.msra.mxu0 0
    %984 = vmatprep.subr.bf16.mxu0 0
    %985 = vmatpush1.bf16.msra.mxu0 0
    %986 = vmatprep.subr.bf16.mxu0 0
    %987 = vmatpush1.bf16.msra.mxu0 0
    %988 = vmatprep.subr.bf16.mxu0 0
    %989 = vmatpush1.bf16.msra.mxu0 0
    %990 = vmatprep.subr.bf16.mxu0 0
    %991 = vmatpush1.bf16.msra.mxu0 %v620
    %992 = vmatprep.subr.bf16.mxu0 0
    %993 = vmatpush1.bf16.msra.mxu0 %v619
    %994 = vmatprep.subr.bf16.mxu0 0
    %995 = vmatpush2.bf16.msra.mxu0 0
    %996 = vmatprep.subr.bf16.mxu0 0
    %997 = vmatpush2.bf16.msra.mxu0 0
    %998 = vmatprep.subr.bf16.mxu0 0
    %999 = vmatpush2.bf16.msra.mxu0 0
    %1000 = vmatprep.subr.bf16.mxu0 0
    %1001 = vmatpush2.bf16.msra.mxu0 0
    %1002 = vmatprep.subr.bf16.mxu0 0
    %1003 = vmatpush2.bf16.msra.mxu0 0
    %1004 = vmatprep.subr.bf16.mxu0 0
    %1005 = vmatpush2.bf16.msra.mxu0 0
    %1006 = vmatprep.subr.bf16.mxu0 0
    %1007 = vmatpush2.bf16.msra.mxu0 0
    %1008 = vmatprep.subr.bf16.mxu0 0
    %1009 = vmatpush2.bf16.msra.mxu0 0
    %1010 = vmatprep.mubr.bf16.mxu0 0
    %1011 = vmatmul.mubr.bf16.gmra.mxu0 %v967
    %v1012 = vpop.f32.mrf.mxu0
    %v1013 = vadd.f32 0.0, %v1012
    %v1014 = vpop.f32.mrf.mxu0
    %v1015 = vpop.f32.mrf.mxu0
    %v1016 = vadd.f32 0.0, %v1015
    %v1017 = vpop.f32.mrf.mxu0
    %1018 = vmatprep.mubr.bf16.mxu0 0
    %1019 = vmatmul.mubr.bf16.gmra.mxu0 %v970
    %v1020 = vpop.f32.mrf.mxu0
    %v1021 = vadd.f32 0.0, %v1020
    %v1022 = vpop.f32.mrf.mxu0
    %v1023 = vpop.f32.mrf.mxu0
    %v1024 = vadd.f32 0.0, %v1023
    %v1025 = vpop.f32.mrf.mxu0
    %1026 = vmatprep.mubr.bf16.mxu0 0
    %1027 = vmatmul.mubr.bf16.gmra.mxu0 %v973
    %v1028 = vpop.f32.mrf.mxu0
    %v1029 = vadd.f32 0.0, %v1028
    %v1030 = vpop.f32.mrf.mxu0
    %v1031 = vpop.f32.mrf.mxu0
    %v1032 = vadd.f32 0.0, %v1031
    %v1033 = vpop.f32.mrf.mxu0
    %1034 = vmatprep.mubr.bf16.mxu0 0
    %1035 = vmatmul.mubr.bf16.gmra.mxu0 %v976
    %v1036 = vpop.f32.mrf.mxu0
    %v1037 = vadd.f32 0.0, %v1036
    %v1038 = vpop.f32.mrf.mxu0
    %v1039 = vpop.f32.mrf.mxu0
    %v1040 = vadd.f32 0.0, %v1039
    %v1041 = vpop.f32.mrf.mxu0
    %1042 = vdwg.mxu0
    %v1043 = vadd.f32 %v928, %v1013
    %v1044 = vadd.f32 %v932, %v1016
    %v1045 = vadd.f32 %v938, %v1021
    %v1046 = vadd.f32 %v942, %v1024
    %v1047 = vadd.f32 %v948, %v1029
    %v1048 = vadd.f32 %v952, %v1032
    %v1049 = vadd.f32 %v958, %v1037
    %v1050 = vadd.f32 %v962, %v1040
    %v1051 = vadd.f32 %v1043, %v724
    %v1052 = vadd.f32 %v1044, %v727
    %v1053 = vadd.f32 %v1045, %v732
    %v1054 = vadd.f32 %v1046, %v735
    %v1055 = vadd.f32 %v1047, %v740
    %v1056 = vadd.f32 %v1048, %v743
    %v1057 = vadd.f32 %v1049, %v748
    %v1058 = vadd.f32 %v1050, %v751
    %v1059 = vxor.u32 %v1051, 2147483648
    %v1060 = vxor.u32 %v1052, 2147483648
    %v1061 = vxor.u32 %v1053, 2147483648
    %v1062 = vxor.u32 %v1054, 2147483648
    %v1063 = vxor.u32 %v1055, 2147483648
    %v1064 = vxor.u32 %v1056, 2147483648
    %v1065 = vxor.u32 %v1057, 2147483648
    %v1066 = vxor.u32 %v1058, 2147483648
    %v1067 = vmul.f32 %v1059, 1.442695
    %v1068 = vpow.pop %v1067
    %v1069 = vmul.f32 %v1060, 1.442695
    %v1070 = vpow.pop %v1069
    %v1071 = vmul.f32 %v1061, 1.442695
    %v1072 = vpow.pop %v1071
    %v1073 = vmul.f32 %v1062, 1.442695
    %v1074 = vpow.pop %v1073
    %v1075 = vmul.f32 %v1063, 1.442695
    %v1076 = vpow.pop %v1075
    %v1077 = vmul.f32 %v1064, 1.442695
    %v1078 = vpow.pop %v1077
    %v1079 = vmul.f32 %v1065, 1.442695
    %v1080 = vpow.pop %v1079
    %v1081 = vmul.f32 %v1066, 1.442695
    %v1082 = vpow.pop %v1081
    %v1083 = vadd.f32 %v1068, 1.0
    %v1084 = vadd.f32 %v1070, 1.0
    %v1085 = vadd.f32 %v1072, 1.0
    %v1086 = vadd.f32 %v1074, 1.0
    %v1087 = vadd.f32 %v1076, 1.0
    %v1088 = vadd.f32 %v1078, 1.0
    %v1089 = vadd.f32 %v1080, 1.0
    %v1090 = vadd.f32 %v1082, 1.0
    %v1091 = vrcp.pop %v1083
    %v1092 = vmul.f32 1.0, %v1091
    %v1093 = vrcp.pop %v1084
    %v1094 = vmul.f32 1.0, %v1093
    %v1095 = vrcp.pop %v1085
    %v1096 = vmul.f32 1.0, %v1095
    %v1097 = vrcp.pop %v1086
    %v1098 = vmul.f32 1.0, %v1097
    %v1099 = vrcp.pop %v1087
    %v1100 = vmul.f32 1.0, %v1099
    %v1101 = vrcp.pop %v1088
    %v1102 = vmul.f32 1.0, %v1101
    %v1103 = vrcp.pop %v1089
    %v1104 = vmul.f32 1.0, %v1103
    %v1105 = vrcp.pop %v1090
    %v1106 = vmul.f32 1.0, %v1105
    %v1107 = vmul.f32 %v930, %v1092
    %v1108 = vmul.f32 %v934, %v1094
    %v1109 = vmul.f32 %v940, %v1096
    %v1110 = vmul.f32 %v944, %v1098
    %v1111 = vmul.f32 %v950, %v1100
    %v1112 = vmul.f32 %v954, %v1102
    %v1113 = vmul.f32 %v960, %v1104
    %v1114 = vmul.f32 %v964, %v1106
    %v1115 = vpack.c.bf16 %v1108, %v1107
    %v1116 = vpack.c.bf16 %v1094, %v1092
    %v1117 = vpack.c.bf16 %v1110, %v1109
    %v1118 = vpack.c.bf16 %v1098, %v1096
    %v1119 = vpack.c.bf16 %v1112, %v1111
    %v1120 = vpack.c.bf16 %v1102, %v1100
    %v1121 = vpack.c.bf16 %v1114, %v1113
    %v1122 = vpack.c.bf16 %v1106, %v1104
    %vm1123 = vcmask 523264
    %v1125 = vsel %vm1123, %v878, 0
    %v1128 = vsel %vm1123, %v879, 0
    %1130 = vmatprep.subr.bf16.mxu0 0
    %1131 = vmatpush1.bf16.msra.mxu0 0
    %1132 = vmatprep.subr.bf16.mxu0 0
    %1133 = vmatpush1.bf16.msra.mxu0 0
    %1134 = vmatprep.subr.bf16.mxu0 0
    %1135 = vmatpush1.bf16.msra.mxu0 0
    %1136 = vmatprep.subr.bf16.mxu0 0
    %1137 = vmatpush1.bf16.msra.mxu0 0
    %1138 = vmatprep.subr.bf16.mxu0 %v1122
    %1139 = vmatpush1.bf16.msra.mxu0 %v1121
    %1140 = vmatprep.subr.bf16.mxu0 %v1120
    %1141 = vmatpush1.bf16.msra.mxu0 %v1119
    %1142 = vmatprep.subr.bf16.mxu0 %v1118
    %1143 = vmatpush1.bf16.msra.mxu0 %v1117
    %1144 = vmatprep.subr.bf16.mxu0 %v1116
    %1145 = vmatpush1.bf16.msra.mxu0 %v1115
    %1146 = vmatprep.subr.bf16.mxu0 0
    %1147 = vmatpush2.bf16.msra.mxu0 0
    %1148 = vmatprep.subr.bf16.mxu0 0
    %1149 = vmatpush2.bf16.msra.mxu0 0
    %1150 = vmatprep.subr.bf16.mxu0 0
    %1151 = vmatpush2.bf16.msra.mxu0 0
    %1152 = vmatprep.subr.bf16.mxu0 0
    %1153 = vmatpush2.bf16.msra.mxu0 0
    %1154 = vmatprep.subr.bf16.mxu0 0
    %1155 = vmatpush2.bf16.msra.mxu0 0
    %1156 = vmatprep.subr.bf16.mxu0 0
    %1157 = vmatpush2.bf16.msra.mxu0 0
    %1158 = vmatprep.subr.bf16.mxu0 0
    %1159 = vmatpush2.bf16.msra.mxu0 0
    %1160 = vmatprep.subr.bf16.mxu0 0
    %1161 = vmatpush2.bf16.msra.mxu0 0
    %1162 = vmatprep.mubr.bf16.mxu0 0
    %1163 = vmatmul.mubr.bf16.gmra.mxu0 %v1125
    %v1164 = vpop.f32.mrf.mxu0
    %v1165 = vadd.f32 0.0, %v1164
    %v1166 = vpop.f32.mrf.mxu0
    %v1167 = vadd.f32 0.0, %v1166
    %v1168 = vpop.f32.mrf.mxu0
    %v1169 = vadd.f32 0.0, %v1168
    %v1170 = vpop.f32.mrf.mxu0
    %v1171 = vadd.f32 0.0, %v1170
    %1172 = vmatprep.mubr.bf16.mxu0 0
    %1173 = vmatmul.mubr.bf16.gmra.mxu0 %v1128
    %v1174 = vpop.f32.mrf.mxu0
    %v1175 = vadd.f32 0.0, %v1174
    %v1176 = vpop.f32.mrf.mxu0
    %v1177 = vadd.f32 0.0, %v1176
    %v1178 = vpop.f32.mrf.mxu0
    %v1179 = vadd.f32 0.0, %v1178
    %v1180 = vpop.f32.mrf.mxu0
    %v1181 = vadd.f32 0.0, %v1180
    %1182 = vdwg.mxu0
    %v1183 = vadd.f32 %v1167, 1e-06
    %v1184 = vadd.f32 %v1171, 1e-06
    %v1185 = vadd.f32 %v1177, 1e-06
    %v1186 = vadd.f32 %v1181, 1e-06
    %v1187 = vrcp.pop %v1183
    %v1188 = vrcp.pop %v1184
    %v1189 = vrcp.pop %v1185
    %v1190 = vrcp.pop %v1186
    %v1191 = vmul.f32 %v1165, %v1187
    %v1192 = vmul.f32 %v1169, %v1188
    %v1193 = vmul.f32 %v1175, %v1189
    %v1194 = vmul.f32 %v1179, %v1190
    %v1195 = vadd.f32 %v71, %v599
    %v1196 = vadd.f32 %v72, %v603
    %v1197 = vadd.f32 %v73, %v609
    %v1198 = vadd.f32 %v74, %v613
    %v1199 = vadd.f32 %v1195, %v1191
    %v1200 = vadd.f32 %v1196, %v1192
    %v1201 = vadd.f32 %v1197, %v1193
    %v1202 = vadd.f32 %v1198, %v1194
    %1203 = vst [vmem:[#allocation7] sm:$0xff] %v1199
    %1204 = vst [vmem:[#allocation7 + $0x8] sm:$0xff] %v1200
    %1205 = vst [vmem:[#allocation7 + $0x10] sm:$0xff] %v1201
    %1206 = vst [vmem:[#allocation7 + $0x18] sm:$0xff] %v1202
    %v1207 = vadd.f32 %v75, %v1051
    %v1208 = vadd.f32 %v76, %v1052
    %v1209 = vadd.f32 %v77, %v1053
    %v1210 = vadd.f32 %v78, %v1054
    %v1211 = vadd.f32 %v79, %v1055
    %v1212 = vadd.f32 %v80, %v1056
    %v1213 = vadd.f32 %v81, %v1057
    %v1214 = vadd.f32 %v82, %v1058
    %1215 = vst [vmem:[#allocation8] sm:$0xff] %v1207
    %1216 = vst [vmem:[#allocation8 + $0x8] sm:$0xff] %v1208
    %1217 = vst [vmem:[#allocation8 + $0x10] sm:$0xff] %v1209
    %1218 = vst [vmem:[#allocation8 + $0x18] sm:$0xff] %v1210
    %1219 = vst [vmem:[#allocation8 + $0x20] sm:$0xff] %v1211
    %1220 = vst [vmem:[#allocation8 + $0x28] sm:$0xff] %v1212
    %1221 = vst [vmem:[#allocation8 + $0x30] sm:$0xff] %v1213
    %1222 = vst [vmem:[#allocation8 + $0x38] sm:$0xff] %v1214
    // Predicated region
    $region54: #{tpu_custom_call.1} parent=1 // pred_check
      _
    $region55: #{tpu_custom_call.1} parent=1 // pred_check_branch
      %1224 = sbr.rel (0) target = $region57
    $region56: #{tpu_custom_call.1} parent=1 // pred_region
      %s1226 = ssub.s32 512, 512
      %1227 = vsyncadd [#allocation4], %s1226
      %s1228 = sshll.u32 [#allocation7], 4
      %s1229 = int_to_ptr.vmem [resolvable:$true] %s1228
      %1234 = dma.vmem_to_hbm [thread:$0]  %s1229, 512, %s11, [#allocation4], 128, 128, 8
    $region57: #{tpu_custom_call.1} parent=1 // pred_fallthru
      _
    // Predicated region
    $region58: #{tpu_custom_call.1} parent=1 // pred_check
      _
    $region59: #{tpu_custom_call.1} parent=1 // pred_check_branch
      %1236 = sbr.rel (0) target = $region61
    $region60: #{tpu_custom_call.1} parent=1 // pred_region
      %s1238 = ssub.s32 1024, 1024
      %1239 = vsyncadd [#allocation9], %s1238
      %s1240 = sshll.u32 [#allocation8], 4
      %s1241 = int_to_ptr.vmem [resolvable:$true] %s1240
      %1246 = dma.vmem_to_hbm [thread:$0]  %s1241, 1024, %s12, [#allocation9], 128, 128, 8
    $region61: #{tpu_custom_call.1} parent=1 // pred_fallthru
      _
    // Predicated region
    $region62: #{tpu_custom_call.1} parent=1 // pred_check
      _
    $region63: #{tpu_custom_call.1} parent=1 // pred_check_branch
      %1248 = sbr.rel (0) target = $region65
    $region64: #{tpu_custom_call.1} parent=1 // pred_region
      %1249 = dma.done [#allocation4], 512
    $region65: #{tpu_custom_call.1} parent=1 // pred_fallthru
      _
    // Predicated region
    $region66: #{tpu_custom_call.1} parent=1 // pred_check
      _
    $region67: #{tpu_custom_call.1} parent=1 // pred_check_branch
      %1251 = sbr.rel (0) target = $region69
    $region68: #{tpu_custom_call.1} parent=1 // pred_region
      %1252 = dma.done [#allocation9], 1024
    $region69: #{tpu_custom_call.1} parent=1 // pred_fallthru
      _
    %1253 = vsyncpa [#allocation3], 1
    %1254 = vsyncpa [#allocation6], 1
    %1255 = vsyncpa [#allocation4], 1
    %1256 = vsyncpa [#allocation9], 1

</llo_original>
